<compile_context>
chip_gen: v6e
topology: v6e:2x2x1
jax: 0.10.0
libtpu: 0.0.40
codegen_flags: <defaults>
</compile_context>

<pallas_src>
import functools

import jax
import jax.numpy as jnp
from jax.experimental import pallas as pl
from jax.experimental.pallas import tpu as pltpu


def _round_up(a, b):
    return (a + b - 1) // b * b


def _entropy_kernel(xt_ref, y_ref, out_ref, *, T, n_valid, tn):
    i = pl.program_id(0)

    # Zero the resident accumulator on the first grid step.
    @pl.when(i == 0)
    def _():
        out_ref[...] = jnp.zeros_like(out_ref)

    x = xt_ref[...].astype(jnp.float32)          # (C, TN) — lane-dense over the batch
    y = y_ref[...].astype(jnp.float32)           # (1, TN)
    inv_t = jnp.float32(1.0 / T)

    # Stable log-sum-exp over the class axis (sublanes; C is small).
    m = jnp.max(x, axis=0, keepdims=True)                                        # (1, TN)
    lse = m * inv_t + jnp.log(jnp.sum(jnp.exp((x - m) * inv_t), axis=0, keepdims=True))

    # loss_i = lse_i - ((1-y)*x0 + y*x1)/T
    target_logit = (1.0 - y) * x[0:1, :] + y * x[1:2, :]                         # (1, TN)
    loss = lse - target_logit * inv_t                                            # (1, TN)

    # Mask out padded columns (global column index >= n_valid).
    col = i * tn + jax.lax.broadcasted_iota(jnp.int32, (1, tn), 1)
    loss = jnp.where(col < n_valid, loss, jnp.float32(0.0))

    out_ref[...] += jnp.sum(loss, axis=1, keepdims=True)                         # (1, 1)

    # Finalize: mean over the true batch size.
    @pl.when(i == pl.num_programs(0) - 1)
    def _():
        out_ref[...] = out_ref[...] * jnp.float32(1.0 / n_valid)


def entropy_loss(x, y, T=1.0, target_block_bytes=2 * 1024 * 1024):
    """x: (N, C) logits with C >= 2 (any float dtype); y: (N,) labels. Returns scalar f32."""
    N, C = x.shape
    assert C >= 2, "Entropy loss indexes class columns 0 and 1; need C >= 2."

    # Lane-dense repack (layout plumbing only — all math stays in the kernel).
    xt = x.T                                      # (C, N), batch along lanes, original dtype
    yt = y.reshape(1, N).astype(jnp.float32)      # (1, N), tiny

    # Tile size over N: multiple of 128 lanes, ~target_block_bytes per x buffer so
    # 2 inputs x 2 pipeline buffers stay far below every generation's VMEM limit.
    itemsize = jnp.dtype(x.dtype).itemsize
    tn = max(128, (target_block_bytes // (C * itemsize)) // 128 * 128)
    tn = min(tn, _round_up(N, 128))
    n_pad = _round_up(N, tn)
    num_tiles = n_pad // tn

    if n_pad != N:
        xt = jnp.pad(xt, ((0, 0), (0, n_pad - N)))
        yt = jnp.pad(yt, ((0, 0), (0, n_pad - N)))

    kernel = functools.partial(_entropy_kernel, T=float(T), n_valid=N, tn=tn)

    out = pl.pallas_call(
        kernel,
        out_shape=jax.ShapeDtypeStruct((1, 1), jnp.float32),
        grid=(num_tiles,),
        in_specs=[
            pl.BlockSpec((C, tn), lambda i: (0, i)),   # (C, TN) logits tile
            pl.BlockSpec((1, tn), lambda i: (0, i)),   # (1, TN) labels tile
        ],
        out_specs=pl.BlockSpec((1, 1), lambda i: (0, 0)),   # resident accumulator
        compiler_params=pltpu.CompilerParams(
            dimension_semantics=("arbitrary",),
        ),
    )(xt, yt)
    return out[0, 0]


def _reference(x, y, T=1.0):
    xf = x.astype(jnp.float32)
    yf = y.astype(jnp.float32)
    p = jnp.exp(xf / T) / jnp.sum(jnp.exp(xf / T), axis=-1, keepdims=True)
    return jnp.mean(-(1.0 - yf) * jnp.log(p[:, 0]) - yf * jnp.log(p[:, 1]))


if __name__ == "__main__":
    key = jax.random.PRNGKey(0)
    kx, ky, kx2, ky2 = jax.random.split(key, 4)

    # Small shape consistent with the module: (N, C) logits with C = 2 classes.
    N, C = 8, 2
    x = jax.random.normal(kx, (N, C), dtype=jnp.float32)
    y = jax.random.bernoulli(ky, p=0.5, shape=(N,)).astype(jnp.float32)

    loss = entropy_loss(x, y, T=1.0)
    jax.block_until_ready(loss)
    ref = _reference(x, y, T=1.0)
    assert jnp.allclose(loss, ref, rtol=1e-5, atol=1e-5), (loss, ref)

    # Second check: non-multiple-of-128 batch with a tiny tile budget to exercise the
    # multi-tile grid, padding mask, and the resident accumulator path.
    N2 = 400
    x2 = jax.random.normal(kx2, (N2, C), dtype=jnp.float32) * 3.0
    y2 = jax.random.bernoulli(ky2, p=0.5, shape=(N2,)).astype(jnp.float32)
    loss2 = entropy_loss(x2, y2, T=2.0, target_block_bytes=1024)   # forces TN=128, 4 tiles
    jax.block_until_ready(loss2)
    ref2 = _reference(x2, y2, T=2.0)
    assert jnp.allclose(loss2, ref2, rtol=1e-5, atol=1e-5), (loss2, ref2)

    print("KERNEL_OK")
</pallas_src>

<mosaic_0001>
module attributes {stable_mosaic.version = 11 : i64} {
  func.func @_entropy_kernel(%arg0: i32, %arg1: memref<2x128xf32, #tpu.memory_space<vmem>>, %arg2: memref<1x128xf32, #tpu.memory_space<vmem>>, %arg3: memref<1x1xf32, #tpu.memory_space<vmem>>) attributes {dimension_semantics = [#tpu.dimension_semantics<arbitrary>], iteration_bounds = array<i64: 1>, scalar_prefetch = 0 : i64, scratch_operands = 0 : i64, tpu.core_type = #tpu.core_type<tc>, window_params = [{transform_indices = @transform_0, window_bounds = array<i64: 2, 128>}, {transform_indices = @transform_1, window_bounds = array<i64: 1, 128>}, {pipeline_mode = #tpu.pipeline_mode<synchronous>, transform_indices = @transform_2, window_bounds = array<i64: 1, 1>}]} {
    %c0_i32 = arith.constant 0 : i32
    %0 = arith.cmpi eq, %arg0, %c0_i32 : i32
    %1 = arith.extui %0 : i1 to i32
    %c0_i32_0 = arith.constant 0 : i32
    %2 = arith.cmpi ne, %1, %c0_i32_0 : i32
    scf.if %2 {
      %cst_17 = arith.constant 0.000000e+00 : f32
      %44 = vector.broadcast %cst_17 : f32 to vector<1x1xf32>
      %c0_18 = arith.constant 0 : index
      %c0_19 = arith.constant 0 : index
      %45 = vector.load %arg3[%c0_18, %c0_19] : memref<1x1xf32, #tpu.memory_space<vmem>>, vector<1x1xf32>
      tpu.vector_store %arg3[%c0_18, %c0_19], %44 {strides = array<i32>} : memref<1x1xf32, #tpu.memory_space<vmem>>, vector<1x1xf32>,
    } else {
    }
    %c0 = arith.constant 0 : index
    %c0_1 = arith.constant 0 : index
    %3 = vector.load %arg1[%c0, %c0_1] : memref<2x128xf32, #tpu.memory_space<vmem>>, vector<2x128xf32>
    %c0_2 = arith.constant 0 : index
    %c0_3 = arith.constant 0 : index
    %4 = vector.load %arg2[%c0_2, %c0_3] : memref<1x128xf32, #tpu.memory_space<vmem>>, vector<1x128xf32>
    %cst = arith.constant dense<0xFF800000> : vector<128xf32>
    %5 = vector.multi_reduction <maximumf>, %3, %cst [0] : vector<2x128xf32> to vector<128xf32>
    %6 = vector.shape_cast %5 : vector<128xf32> to vector<1x128xf32>
    %cst_4 = arith.constant 1.000000e+00 : f32
    %7 = vector.broadcast %cst_4 : f32 to vector<1x128xf32>
    %8 = arith.mulf %6, %7 : vector<1x128xf32>
    %9 = vector.broadcast %6 : vector<1x128xf32> to vector<2x128xf32>
    %10 = arith.subf %3, %9 : vector<2x128xf32>
    %cst_5 = arith.constant 1.000000e+00 : f32
    %11 = vector.broadcast %cst_5 : f32 to vector<2x128xf32>
    %12 = arith.mulf %10, %11 : vector<2x128xf32>
    %13 = math.exp %12 : vector<2x128xf32>
    %cst_6 = arith.constant dense<0.000000e+00> : vector<128xf32>
    %14 = vector.multi_reduction <add>, %13, %cst_6 [0] : vector<2x128xf32> to vector<128xf32>
    %15 = vector.shape_cast %14 : vector<128xf32> to vector<1x128xf32>
    %16 = math.log %15 : vector<1x128xf32>
    %17 = arith.addf %8, %16 : vector<1x128xf32>
    %cst_7 = arith.constant 1.000000e+00 : f32
    %18 = vector.broadcast %cst_7 : f32 to vector<1x128xf32>
    %19 = arith.subf %18, %4 : vector<1x128xf32>
    %20 = vector.extract_strided_slice %3 {offsets = [0, 0], sizes = [1, 128], strides = [1, 1]} : vector<2x128xf32> to vector<1x128xf32>
    %21 = arith.mulf %19, %20 : vector<1x128xf32>
    %22 = vector.extract_strided_slice %3 {offsets = [1, 0], sizes = [1, 128], strides = [1, 1]} : vector<2x128xf32> to vector<1x128xf32>
    %23 = arith.mulf %4, %22 : vector<1x128xf32>
    %24 = arith.addf %21, %23 : vector<1x128xf32>
    %cst_8 = arith.constant 1.000000e+00 : f32
    %25 = vector.broadcast %cst_8 : f32 to vector<1x128xf32>
    %26 = arith.mulf %24, %25 : vector<1x128xf32>
    %27 = arith.subf %17, %26 : vector<1x128xf32>
    %c128_i32 = arith.constant 128 : i32
    %28 = arith.muli %arg0, %c128_i32 : i32
    %29 = tpu.iota {dimensions = array<i32: 1>} : vector<1x128xi32>
    %30 = vector.broadcast %28 : i32 to vector<1x128xi32>
    %31 = arith.addi %30, %29 : vector<1x128xi32>
    %c8_i32 = arith.constant 8 : i32
    %32 = vector.broadcast %c8_i32 : i32 to vector<1x128xi32>
    %33 = arith.cmpi slt, %31, %32 : vector<1x128xi32>
    %cst_9 = arith.constant 0.000000e+00 : f32
    %34 = vector.broadcast %cst_9 : f32 to vector<1x128xf32>
    %35 = arith.select %33, %27, %34 : vector<1x128xi1>, vector<1x128xf32>
    %c0_10 = arith.constant 0 : index
    %c0_11 = arith.constant 0 : index
    %36 = vector.load %arg3[%c0_10, %c0_11] : memref<1x1xf32, #tpu.memory_space<vmem>>, vector<1x1xf32>
    %cst_12 = arith.constant dense<0.000000e+00> : vector<1xf32>
    %37 = vector.multi_reduction <add>, %35, %cst_12 [1] : vector<1x128xf32> to vector<1xf32>
    %38 = vector.shape_cast %37 : vector<1xf32> to vector<1x1xf32>
    %39 = arith.addf %36, %38 : vector<1x1xf32>
    %c0_13 = arith.constant 0 : index
    %c0_14 = arith.constant 0 : index
    %40 = vector.load %arg3[%c0_13, %c0_14] : memref<1x1xf32, #tpu.memory_space<vmem>>, vector<1x1xf32>
    tpu.vector_store %arg3[%c0_13, %c0_14], %39 {strides = array<i32>} : memref<1x1xf32, #tpu.memory_space<vmem>>, vector<1x1xf32>,
    %c0_i32_15 = arith.constant 0 : i32
    %41 = arith.cmpi eq, %arg0, %c0_i32_15 : i32
    %42 = arith.extui %41 : i1 to i32
    %c0_i32_16 = arith.constant 0 : i32
    %43 = arith.cmpi ne, %42, %c0_i32_16 : i32
    scf.if %43 {
      %c0_17 = arith.constant 0 : index
      %c0_18 = arith.constant 0 : index
      %44 = vector.load %arg3[%c0_17, %c0_18] : memref<1x1xf32, #tpu.memory_space<vmem>>, vector<1x1xf32>
      %cst_19 = arith.constant 1.250000e-01 : f32
      %45 = vector.broadcast %cst_19 : f32 to vector<1x1xf32>
      %46 = arith.mulf %44, %45 : vector<1x1xf32>
      %c0_20 = arith.constant 0 : index
      %c0_21 = arith.constant 0 : index
      %47 = vector.load %arg3[%c0_20, %c0_21] : memref<1x1xf32, #tpu.memory_space<vmem>>, vector<1x1xf32>
      tpu.vector_store %arg3[%c0_20, %c0_21], %46 {strides = array<i32>} : memref<1x1xf32, #tpu.memory_space<vmem>>, vector<1x1xf32>,
    } else {
    }
    return
  }
  func.func @transform_0(%arg0: i32) -> (i32, i32) {
    %c0_i32 = arith.constant 0 : i32
    %c0_i32_0 = arith.constant 0 : i32
    return %c0_i32, %arg0 : i32, i32
  }
  func.func @transform_1(%arg0: i32) -> (i32, i32) {
    %c0_i32 = arith.constant 0 : i32
    %c0_i32_0 = arith.constant 0 : i32
    return %c0_i32, %arg0 : i32, i32
  }
  func.func @transform_2(%arg0: i32) -> (i32, i32) {
    %c0_i32 = arith.constant 0 : i32
    %c0_i32_0 = arith.constant 0 : i32
    %c0_i32_1 = arith.constant 0 : i32
    return %c0_i32, %c0_i32_0 : i32, i32
  }
}

</mosaic_0001>

<llo_original>
// kernel: tpu_custom_call.1
$region0: #{tpu_custom_call.1}
  #allocation0 [shape = 'u32[]', space=smem, size = 0x4, offset = 0x4, fixed_abs, tag = 'smem constant byte address 0x4 - core index']
  #allocation1 [shape = 'u32[144,128]{1,0:T(1,128)}', space=vmem, size = 0x12000, scoped, tag = 'internal scratch']
  %s0 = inlined_call_operand.hbm [shape: f32[2,128], index: 0, kind: input, shape index: {}]
  %s1 = inlined_call_operand.vmem [shape: f32[1,128], index: 1, kind: input, shape index: {}]
  %s2 = inlined_call_operand.hbm [shape: f32[1,1], index: 2, kind: output, shape index: {}]
  %s3 = sld [smem:[#allocation0]]
  $region30: #{tpu_custom_call.1} parent=0
    _
  %s5 = ssub.s32 1, %s3
  %s6 = scalar_select 0, %s5, %s3
  $region1: #{tpu_custom_call.1} parent=0
    #allocation2 [shape = 'u8[1024]{0}', space=vmem, size = 0x400, scoped, tag = 'input window, operand 0, single buffered']
    #allocation3 [shape = 's32[1]{0}', space=sflag, size = 0x4, scoped, tag = 'scoped memory for tpu_custom_call.1']
    #allocation4 [shape = 's32[1]{0}', space=sflag, size = 0x4, scoped, tag = 'scoped memory for tpu_custom_call.1']
    #allocation5 [shape = 'u8[512]{0}', space=vmem, size = 0x400, scoped, tag = 'output window, operand 0, single buffered']
    %7 = vsyncpa [#allocation3], 0
    %8 = vsyncpa [#allocation4], 0
    // Predicated region
    $region2: #{tpu_custom_call.1} parent=1 // pred_check
      _
    $region3: #{tpu_custom_call.1} parent=1 // pred_check_branch
      %10 = sbr.rel (0) target = $region5
    $region4: #{tpu_custom_call.1} parent=1 // pred_region
      %s12 = ssub.s32 32, 32
      %13 = vsyncadd [#allocation3], %s12
      %s15 = sshll.u32 [#allocation2], 4
      %s16 = int_to_ptr.vmem [resolvable:$true] %s15
      %18 = dma.hbm_to_vmem [thread:$0]  %s0, 32, %s16, [#allocation3]
    $region5: #{tpu_custom_call.1} parent=1 // pred_fallthru
      _
    // Predicated region
    $region6: #{tpu_custom_call.1} parent=1 // pred_check
      _
    $region7: #{tpu_custom_call.1} parent=1 // pred_check_branch
      %20 = sbr.rel (0) target = $region9
    $region8: #{tpu_custom_call.1} parent=1 // pred_region
      _
    $region9: #{tpu_custom_call.1} parent=1 // pred_fallthru
      _
    // Predicated region
    $region10: #{tpu_custom_call.1} parent=1 // pred_check
      _
    $region11: #{tpu_custom_call.1} parent=1 // pred_check_branch
      %22 = sbr.rel (0) target = $region13
    $region12: #{tpu_custom_call.1} parent=1 // pred_region
      %23 = dma.done [#allocation3], 32
    $region13: #{tpu_custom_call.1} parent=1 // pred_fallthru
      _
    %p24 = scmp.eq.s32.totalorder 0, 0
    // Predicated region
    $region14: #{tpu_custom_call.1} parent=1 // pred_check
      %p25 = pneg %p24
    $region15: #{tpu_custom_call.1} parent=1 // pred_check_branch
      %27 = sbr.rel (%p25) target = $region17
    $region16: #{tpu_custom_call.1} parent=1 // pred_region
      %vm28 = vcmask 0
      %29 = vst.msk [vmem:[#allocation5] sm:$0x1] %vm28, 0.0
    $region17: #{tpu_custom_call.1} parent=1 // pred_fallthru
      _
    %v30 = vld [vmem:[#allocation2] sm:$0x3]
    %v31 = vld [vmem:[%s1] sm:$0x1]
    %vm32 = vcmask 1041408
    %v33 = vsel %vm32, %v30, -inf
    %v34 = vrot.slane %v33, 4
    %v35 = vmax.f32 %v33, %v34
    %v36 = vrot.slane %v35, 2
    %v37 = vmax.f32 %v35, %v36
    %v38 = vrot.slane %v37, 1
    %v39 = vmax.f32 %v37, %v38
    %v40 = vsub.f32 %v30, %v39
    %v41 = vmul.f32 %v40, 1.442695
    %v42 = vpow.pop %v41
    %v43 = vsel %vm32, %v42, 0.0
    %v44 = vrot.slane %v43, 4
    %v45 = vadd.f32 %v43, %v44
    %v46 = vrot.slane %v45, 2
    %v47 = vadd.f32 %v45, %v46
    %v48 = vrot.slane %v47, 1
    %v49 = vadd.f32 %v47, %v48
    %v50 = vlog2.pop %v49
    %v51 = vmul.f32 %v50, 0.6931472
    %v52 = vadd.f32 %v39, %v51
    %v53 = vsub.f32 1.0, %v31
    %v54 = vmul.f32 %v53, %v30
    %v57 = vunpack.c.l.s4 1966171168
    %v58 = vunpack.c.0.s8 %v57
    %v59 = vlaneseq
    %v60 = vshrl.u32 %v59, 7
    %v61 = vsub.s32 %v58, %v60
    %v62 = vrot.slane %v30, %v61
    %v63 = vcombine.high %v62, %v62
    %v65 = vunpack.c.l.s4 1966171168
    %v66 = vunpack.c.0.s8 %v65
    %v67 = vlaneseq
    %v68 = vshrl.u32 %v67, 7
    %v69 = vsub.s32 %v66, %v68
    %v70 = vrot.slane %v63, %v69
    %v72 = vmul.f32 %v31, %v70
    %v73 = vadd.f32 %v54, %v72
    %v74 = vsub.f32 %v52, %v73
    %s75 = smul.u32 0, 128
    %v76 = vlaneseq
    %v77 = vand.u32 %v76, 127
    %v78 = vstv %s75
    %v79 = vadd.s32 %v78, %v77
    %vm80 = vcmp.lt.s32.totalorder %v79, 8
    %v81 = vsel %vm80, %v74, 0.0
    %v82 = vld [vmem:[#allocation5] sm:$0x1]
    %vm83 = vcmask 1040384
    %v84 = vsel %vm83, %v81, 0.0
    %85 = vadd.xlane.f32.xlu0 %v84
    %v86 = vpop.xlane.xlu0 %85
    %v87 = vadd.f32 %v82, %v86
    %vm88 = vcmask 0
    %89 = vst.msk [vmem:[#allocation5] sm:$0x1] %vm88, %v87
    // Predicated region
    $region18: #{tpu_custom_call.1} parent=1 // pred_check
      %p90 = pneg %p24
    $region19: #{tpu_custom_call.1} parent=1 // pred_check_branch
      %92 = sbr.rel (%p90) target = $region21
    $region20: #{tpu_custom_call.1} parent=1 // pred_region
      %v93 = vld [vmem:[#allocation5] sm:$0x1]
      %v94 = vmul.f32 %v93, 0.125
      %95 = vst.msk [vmem:[#allocation5] sm:$0x1] %vm88, %v94
    $region21: #{tpu_custom_call.1} parent=1 // pred_fallthru
      _
    // Predicated region
    $region22: #{tpu_custom_call.1} parent=1 // pred_check
      _
    $region23: #{tpu_custom_call.1} parent=1 // pred_check_branch
      %97 = sbr.rel (0) target = $region25
    $region24: #{tpu_custom_call.1} parent=1 // pred_region
      %s99 = ssub.s32 16, 16
      %100 = vsyncadd [#allocation4], %s99
      %s102 = sshll.u32 [#allocation5], 4
      %s103 = int_to_ptr.vmem [resolvable:$true] %s102
      %105 = dma.vmem_to_hbm [thread:$0]  %s103, 16, %s2, [#allocation4]
    $region25: #{tpu_custom_call.1} parent=1 // pred_fallthru
      _
    // Predicated region
    $region26: #{tpu_custom_call.1} parent=1 // pred_check
      _
    $region27: #{tpu_custom_call.1} parent=1 // pred_check_branch
      %107 = sbr.rel (0) target = $region29
    $region28: #{tpu_custom_call.1} parent=1 // pred_region
      %108 = dma.done [#allocation4], 16
    $region29: #{tpu_custom_call.1} parent=1 // pred_fallthru
      _
    %109 = vsyncpa [#allocation3], 1
    %110 = vsyncpa [#allocation4], 1

</llo_original>
